<compile_context>
chip_gen: v7x
topology: tpu7x:2x2x1
jax: 0.10.0
libtpu: 0.0.40
codegen_flags: <defaults>
</compile_context>

<pallas_src>
import jax
import jax.numpy as jnp
from jax.experimental import pallas as pl
from jax.experimental.pallas import tpu as pltpu

EPS = 1e-5


def lstm_kernel(xh0_ref, c0_ref, w_cat_ref, b_ref, w_eff_ref, b_eff_ref,
                w_blk_ref, b_out_ref, out_ref):
    """Full n_frames recurrence in one invocation (statically unrolled)."""
    B = out_ref.shape[0]
    H = w_eff_ref.shape[0]                 # hidden size
    O = w_cat_ref.shape[0] - H             # output size (== input size)
    n_frames = out_ref.shape[1] // O

    # Weights read once; bias broadcasts hoisted out of the loop
    # (JAX does not CSE broadcast_in_dim).
    w_cat = w_cat_ref[...]                                   # (I+H, 4H), g-cols *2
    w_eff = w_eff_ref[...]                                   # (H,   4H), g-cols *2
    b0 = jnp.broadcast_to(b_ref[...], (B, 4 * H))            # step-0 bias
    b_eff = jnp.broadcast_to(b_eff_ref[...], (B, 4 * H))     # steps >=1 bias

    c = c0_ref[...]                                          # carried cell (B, H)
    h = None
    hs = []

    # Static trip count -> fully unrolled.  At larger n_frames switch to
    # lax.fori_loop(..., unroll=True) with chunked output writes.
    for t in range(n_frames):
        if t == 0:
            # gates_0 = [x0, h0] @ [W_ih^T ; W_hh^T] + (b_ih + b_hh)
            gates = jnp.dot(xh0_ref[...], w_cat,
                            preferred_element_type=jnp.float32) + b0
        else:
            # Linear feedback folded in: gates_t = h_{t-1} @ W_eff + b_eff
            gates = jnp.dot(h, w_eff,
                            preferred_element_type=jnp.float32) + b_eff

        # Single EUP pass over the full (B, 4H) vreg; g gate recovered via
        # tanh(x) = 2*sigmoid(2x) - 1 (its columns were pre-scaled by 2).
        sig = jax.nn.sigmoid(gates)
        i_g = sig[:, 0:H]
        f_g = sig[:, H:2 * H]
        g_g = 2.0 * sig[:, 2 * H:3 * H] - 1.0
        o_g = sig[:, 3 * H:4 * H]

        c = f_g * c + i_g * g_g
        h = o_g * jnp.tanh(c)
        hs.append(h)

    # ---- everything below is off the recurrence critical path ----

    # All output projections in one block-diagonal matmul:
    # (B, T*H) @ blockdiag(w_lin^T) -> (B, T*O), then the (BN-cancelled) bias.
    h_cat = jnp.concatenate(hs, axis=1)                      # (B, T*H)
    y = jnp.dot(h_cat, w_blk_ref[...], preferred_element_type=jnp.float32)
    y = y + jnp.broadcast_to(b_out_ref[...], (B, n_frames * O))

    # BatchNorm1d(affine=False), training mode, hoisted to one full-slab pass:
    # per-column batch stats == per-timestep, per-feature stats.
    mean = jnp.mean(y, axis=0, keepdims=True)
    var = jnp.mean((y - mean) ** 2, axis=0, keepdims=True)

    # Single lane-dense (B, n_frames*O) store -> one HBM writeback at exit.
    out_ref[...] = (y - mean) * jax.lax.rsqrt(var + EPS)


def lstm_forward(x0, h0, c0, w_ih, w_hh, b_ih, b_hh, w_lin, b_lin, n_frames):
    B, I = x0.shape
    H = h0.shape[1]
    O = w_lin.shape[0]                      # == I

    f32 = jnp.float32
    # Wrapper-side layout / algebra plumbing (not compute):
    w_cat = jnp.concatenate([jnp.asarray(w_ih, f32).T,
                             jnp.asarray(w_hh, f32).T], axis=0)   # (I+H, 4H)
    b = jnp.asarray((b_ih + b_hh).reshape(1, 4 * H), f32)

    # tanh-from-sigmoid identity: pre-scale the g-gate columns by 2 so the
    # kernel needs only one sigmoid over the full gate vector.
    g_scale = jnp.concatenate([jnp.ones((2 * H,), f32),
                               jnp.full((H,), 2.0, f32),
                               jnp.ones((H,), f32)])[None, :]      # (1, 4H)
    w_cat = w_cat * g_scale
    b = b * g_scale

    w_lin_t = jnp.asarray(w_lin, f32).T                            # (H, O)
    b_lin2 = jnp.asarray(b_lin.reshape(1, O), f32)

    # Fold the Linear feedback into the gate matmul for steps t >= 1.
    w_eff = w_cat[I:, :] + w_lin_t @ w_cat[:I, :]                  # (H, 4H)
    b_eff = b + b_lin2 @ w_cat[:I, :]                              # (1, 4H)

    # Initial carried [x0, h0] (zero initial hidden/cell state assumed).
    xh0 = jnp.concatenate([jnp.asarray(x0, f32), jnp.asarray(h0, f32)], axis=1)

    # Block-diagonal output projection: all y_t in one dot after the loop.
    w_blk = jnp.kron(jnp.eye(n_frames, dtype=f32), w_lin_t)        # (T*H, T*O)
    b_out = jnp.tile(b_lin2, (1, n_frames))                        # (1, T*O)

    vmem = pl.BlockSpec(memory_space=pltpu.MemorySpace.VMEM)
    out_slab = pl.pallas_call(
        lstm_kernel,
        out_shape=jax.ShapeDtypeStruct((B, n_frames * O), jnp.float32),
        in_specs=[vmem] * 8,
        out_specs=vmem,
        # No grid: the recurrence is inherently sequential; a grid only re-adds
        # per-step pipeline overhead.  (For v7x megacore at batch>=16, shard
        # the batch across cores -- never the time axis, which carries state.)
    )(xh0, jnp.asarray(c0, f32), w_cat, b, w_eff, b_eff, w_blk, b_out)

    # (B, n_frames*O) lane-dense slab -> (n_frames, B, O), matching torch.stack.
    return jnp.transpose(out_slab.reshape(B, n_frames, O), (1, 0, 2))


def reference(x0, h0, c0, w_ih, w_hh, b_ih, b_hh, w_lin, b_lin, n_frames):
    """Pure-JAX reference mirroring the PyTorch forward."""
    x, h, c = x0, h0, c0
    H = h.shape[1]
    outs = []
    for _ in range(n_frames):
        gates = x @ w_ih.T + b_ih + h @ w_hh.T + b_hh
        i = jax.nn.sigmoid(gates[:, :H])
        f = jax.nn.sigmoid(gates[:, H:2 * H])
        g = jnp.tanh(gates[:, 2 * H:3 * H])
        o = jax.nn.sigmoid(gates[:, 3 * H:])
        c = f * c + i * g
        h = o * jnp.tanh(c)
        x = h @ w_lin.T + b_lin
        outs.append(x)

    def bn(e):
        m = e.mean(0, keepdims=True)
        v = ((e - m) ** 2).mean(0, keepdims=True)
        return (e - m) / jnp.sqrt(v + EPS)

    return jnp.stack([bn(e) for e in outs])


if __name__ == "__main__":
    input_size = 16
    hidden_size = 32
    batch = 8
    n_frames = 8

    key = jax.random.PRNGKey(0)
    ks = jax.random.split(key, 8)
    k_scale = 1.0 / jnp.sqrt(hidden_size)

    # PyTorch-style uniform(-1/sqrt(H), 1/sqrt(H)) init, deterministic.
    w_ih = jax.random.uniform(ks[0], (4 * hidden_size, input_size),
                              minval=-k_scale, maxval=k_scale, dtype=jnp.float32)
    w_hh = jax.random.uniform(ks[1], (4 * hidden_size, hidden_size),
                              minval=-k_scale, maxval=k_scale, dtype=jnp.float32)
    b_ih = jax.random.uniform(ks[2], (4 * hidden_size,),
                              minval=-k_scale, maxval=k_scale, dtype=jnp.float32)
    b_hh = jax.random.uniform(ks[3], (4 * hidden_size,),
                              minval=-k_scale, maxval=k_scale, dtype=jnp.float32)
    w_lin = jax.random.uniform(ks[4], (input_size, hidden_size),
                               minval=-k_scale, maxval=k_scale, dtype=jnp.float32)
    b_lin = jax.random.uniform(ks[5], (input_size,),
                               minval=-k_scale, maxval=k_scale, dtype=jnp.float32)

    x0 = jax.random.normal(ks[6], (batch, input_size), dtype=jnp.float32)
    h0 = jnp.zeros((batch, hidden_size), jnp.float32)
    c0 = jnp.zeros((batch, hidden_size), jnp.float32)

    out = lstm_forward(x0, h0, c0, w_ih, w_hh, b_ih, b_hh, w_lin, b_lin, n_frames)
    out = jax.block_until_ready(out)

    ref = reference(x0, h0, c0, w_ih, w_hh, b_ih, b_hh, w_lin, b_lin, n_frames)
    assert out.shape == (n_frames, batch, input_size)
    # Algebraic fusions (W_eff fold, tanh-from-sigmoid) are exact in real
    # arithmetic but perturb fp rounding slightly -> modest tolerance.
    assert jnp.allclose(out, ref, atol=2e-4, rtol=2e-4), "mismatch vs reference"

    print("KERNEL_OK")
</pallas_src>

<mosaic_0001>
module attributes {stable_mosaic.version = 11 : i64} {
  func.func @lstm_kernel(%arg0: memref<8x48xf32, #tpu.memory_space<vmem>>, %arg1: memref<8x32xf32, #tpu.memory_space<vmem>>, %arg2: memref<48x128xf32, #tpu.memory_space<vmem>>, %arg3: memref<1x128xf32, #tpu.memory_space<vmem>>, %arg4: memref<32x128xf32, #tpu.memory_space<vmem>>, %arg5: memref<1x128xf32, #tpu.memory_space<vmem>>, %arg6: memref<256x128xf32, #tpu.memory_space<vmem>>, %arg7: memref<1x128xf32, #tpu.memory_space<vmem>>, %arg8: memref<8x128xf32, #tpu.memory_space<vmem>>) attributes {dimension_semantics = [], scalar_prefetch = 0 : i64, scratch_operands = 0 : i64, tpu.core_type = #tpu.core_type<tc>} {
    %c0 = arith.constant 0 : index
    %c0_0 = arith.constant 0 : index
    %0 = vector.load %arg2[%c0, %c0_0] : memref<48x128xf32, #tpu.memory_space<vmem>>, vector<48x128xf32>
    %c0_1 = arith.constant 0 : index
    %c0_2 = arith.constant 0 : index
    %1 = vector.load %arg4[%c0_1, %c0_2] : memref<32x128xf32, #tpu.memory_space<vmem>>, vector<32x128xf32>
    %c0_3 = arith.constant 0 : index
    %c0_4 = arith.constant 0 : index
    %2 = vector.load %arg3[%c0_3, %c0_4] : memref<1x128xf32, #tpu.memory_space<vmem>>, vector<1x128xf32>
    %3 = vector.shape_cast %2 : vector<1x128xf32> to vector<1x128xf32>
    %4 = vector.broadcast %3 : vector<1x128xf32> to vector<8x128xf32>
    %c0_5 = arith.constant 0 : index
    %c0_6 = arith.constant 0 : index
    %5 = vector.load %arg5[%c0_5, %c0_6] : memref<1x128xf32, #tpu.memory_space<vmem>>, vector<1x128xf32>
    %6 = vector.shape_cast %5 : vector<1x128xf32> to vector<1x128xf32>
    %7 = vector.broadcast %6 : vector<1x128xf32> to vector<8x128xf32>
    %c0_7 = arith.constant 0 : index
    %c0_8 = arith.constant 0 : index
    %8 = vector.load %arg1[%c0_7, %c0_8] : memref<8x32xf32, #tpu.memory_space<vmem>>, vector<8x32xf32>
    %c0_9 = arith.constant 0 : index
    %c0_10 = arith.constant 0 : index
    %9 = vector.load %arg0[%c0_9, %c0_10] : memref<8x48xf32, #tpu.memory_space<vmem>>, vector<8x48xf32>
    %cst = arith.constant dense<0.000000e+00> : vector<8x128xf32>
    %10 = tpu.matmul %9, %0, %cst {dimension_numbers = #tpu.dot_dimension_numbers<[1], [0], [0], [1], [0, 0, 1, 1], [], []>} : vector<8x48xf32>, vector<48x128xf32>, vector<8x128xf32> -> vector<8x128xf32>
    %11 = arith.addf %10, %4 : vector<8x128xf32>
    %12 = arith.negf %11 : vector<8x128xf32>
    %13 = math.exp %12 : vector<8x128xf32>
    %cst_11 = arith.constant 1.000000e+00 : f32
    %14 = vector.broadcast %cst_11 : f32 to vector<8x128xf32>
    %15 = arith.addf %14, %13 : vector<8x128xf32>
    %16 = arith.divf %14, %15 : vector<8x128xf32>
    %17 = vector.extract_strided_slice %16 {offsets = [0, 0], sizes = [8, 32], strides = [1, 1]} : vector<8x128xf32> to vector<8x32xf32>
    %18 = vector.extract_strided_slice %16 {offsets = [0, 32], sizes = [8, 32], strides = [1, 1]} : vector<8x128xf32> to vector<8x32xf32>
    %19 = vector.extract_strided_slice %16 {offsets = [0, 64], sizes = [8, 32], strides = [1, 1]} : vector<8x128xf32> to vector<8x32xf32>
    %cst_12 = arith.constant 2.000000e+00 : f32
    %20 = vector.broadcast %cst_12 : f32 to vector<8x32xf32>
    %21 = arith.mulf %20, %19 : vector<8x32xf32>
    %cst_13 = arith.constant 1.000000e+00 : f32
    %22 = vector.broadcast %cst_13 : f32 to vector<8x32xf32>
    %23 = arith.subf %21, %22 : vector<8x32xf32>
    %24 = vector.extract_strided_slice %16 {offsets = [0, 96], sizes = [8, 32], strides = [1, 1]} : vector<8x128xf32> to vector<8x32xf32>
    %25 = arith.mulf %18, %8 : vector<8x32xf32>
    %26 = arith.mulf %17, %23 : vector<8x32xf32>
    %27 = arith.addf %25, %26 : vector<8x32xf32>
    %28 = math.tanh %27 : vector<8x32xf32>
    %29 = arith.mulf %24, %28 : vector<8x32xf32>
    %cst_14 = arith.constant dense<0.000000e+00> : vector<8x128xf32>
    %30 = tpu.matmul %29, %1, %cst_14 {dimension_numbers = #tpu.dot_dimension_numbers<[1], [0], [0], [1], [0, 0, 1, 1], [], []>} : vector<8x32xf32>, vector<32x128xf32>, vector<8x128xf32> -> vector<8x128xf32>
    %31 = arith.addf %30, %7 : vector<8x128xf32>
    %32 = arith.negf %31 : vector<8x128xf32>
    %33 = math.exp %32 : vector<8x128xf32>
    %cst_15 = arith.constant 1.000000e+00 : f32
    %34 = vector.broadcast %cst_15 : f32 to vector<8x128xf32>
    %35 = arith.addf %34, %33 : vector<8x128xf32>
    %36 = arith.divf %34, %35 : vector<8x128xf32>
    %37 = vector.extract_strided_slice %36 {offsets = [0, 0], sizes = [8, 32], strides = [1, 1]} : vector<8x128xf32> to vector<8x32xf32>
    %38 = vector.extract_strided_slice %36 {offsets = [0, 32], sizes = [8, 32], strides = [1, 1]} : vector<8x128xf32> to vector<8x32xf32>
    %39 = vector.extract_strided_slice %36 {offsets = [0, 64], sizes = [8, 32], strides = [1, 1]} : vector<8x128xf32> to vector<8x32xf32>
    %cst_16 = arith.constant 2.000000e+00 : f32
    %40 = vector.broadcast %cst_16 : f32 to vector<8x32xf32>
    %41 = arith.mulf %40, %39 : vector<8x32xf32>
    %cst_17 = arith.constant 1.000000e+00 : f32
    %42 = vector.broadcast %cst_17 : f32 to vector<8x32xf32>
    %43 = arith.subf %41, %42 : vector<8x32xf32>
    %44 = vector.extract_strided_slice %36 {offsets = [0, 96], sizes = [8, 32], strides = [1, 1]} : vector<8x128xf32> to vector<8x32xf32>
    %45 = arith.mulf %38, %27 : vector<8x32xf32>
    %46 = arith.mulf %37, %43 : vector<8x32xf32>
    %47 = arith.addf %45, %46 : vector<8x32xf32>
    %48 = math.tanh %47 : vector<8x32xf32>
    %49 = arith.mulf %44, %48 : vector<8x32xf32>
    %cst_18 = arith.constant dense<0.000000e+00> : vector<8x128xf32>
    %50 = tpu.matmul %49, %1, %cst_18 {dimension_numbers = #tpu.dot_dimension_numbers<[1], [0], [0], [1], [0, 0, 1, 1], [], []>} : vector<8x32xf32>, vector<32x128xf32>, vector<8x128xf32> -> vector<8x128xf32>
    %51 = arith.addf %50, %7 : vector<8x128xf32>
    %52 = arith.negf %51 : vector<8x128xf32>
    %53 = math.exp %52 : vector<8x128xf32>
    %cst_19 = arith.constant 1.000000e+00 : f32
    %54 = vector.broadcast %cst_19 : f32 to vector<8x128xf32>
    %55 = arith.addf %54, %53 : vector<8x128xf32>
    %56 = arith.divf %54, %55 : vector<8x128xf32>
    %57 = vector.extract_strided_slice %56 {offsets = [0, 0], sizes = [8, 32], strides = [1, 1]} : vector<8x128xf32> to vector<8x32xf32>
    %58 = vector.extract_strided_slice %56 {offsets = [0, 32], sizes = [8, 32], strides = [1, 1]} : vector<8x128xf32> to vector<8x32xf32>
    %59 = vector.extract_strided_slice %56 {offsets = [0, 64], sizes = [8, 32], strides = [1, 1]} : vector<8x128xf32> to vector<8x32xf32>
    %cst_20 = arith.constant 2.000000e+00 : f32
    %60 = vector.broadcast %cst_20 : f32 to vector<8x32xf32>
    %61 = arith.mulf %60, %59 : vector<8x32xf32>
    %cst_21 = arith.constant 1.000000e+00 : f32
    %62 = vector.broadcast %cst_21 : f32 to vector<8x32xf32>
    %63 = arith.subf %61, %62 : vector<8x32xf32>
    %64 = vector.extract_strided_slice %56 {offsets = [0, 96], sizes = [8, 32], strides = [1, 1]} : vector<8x128xf32> to vector<8x32xf32>
    %65 = arith.mulf %58, %47 : vector<8x32xf32>
    %66 = arith.mulf %57, %63 : vector<8x32xf32>
    %67 = arith.addf %65, %66 : vector<8x32xf32>
    %68 = math.tanh %67 : vector<8x32xf32>
    %69 = arith.mulf %64, %68 : vector<8x32xf32>
    %cst_22 = arith.constant dense<0.000000e+00> : vector<8x128xf32>
    %70 = tpu.matmul %69, %1, %cst_22 {dimension_numbers = #tpu.dot_dimension_numbers<[1], [0], [0], [1], [0, 0, 1, 1], [], []>} : vector<8x32xf32>, vector<32x128xf32>, vector<8x128xf32> -> vector<8x128xf32>
    %71 = arith.addf %70, %7 : vector<8x128xf32>
    %72 = arith.negf %71 : vector<8x128xf32>
    %73 = math.exp %72 : vector<8x128xf32>
    %cst_23 = arith.constant 1.000000e+00 : f32
    %74 = vector.broadcast %cst_23 : f32 to vector<8x128xf32>
    %75 = arith.addf %74, %73 : vector<8x128xf32>
    %76 = arith.divf %74, %75 : vector<8x128xf32>
    %77 = vector.extract_strided_slice %76 {offsets = [0, 0], sizes = [8, 32], strides = [1, 1]} : vector<8x128xf32> to vector<8x32xf32>
    %78 = vector.extract_strided_slice %76 {offsets = [0, 32], sizes = [8, 32], strides = [1, 1]} : vector<8x128xf32> to vector<8x32xf32>
    %79 = vector.extract_strided_slice %76 {offsets = [0, 64], sizes = [8, 32], strides = [1, 1]} : vector<8x128xf32> to vector<8x32xf32>
    %cst_24 = arith.constant 2.000000e+00 : f32
    %80 = vector.broadcast %cst_24 : f32 to vector<8x32xf32>
    %81 = arith.mulf %80, %79 : vector<8x32xf32>
    %cst_25 = arith.constant 1.000000e+00 : f32
    %82 = vector.broadcast %cst_25 : f32 to vector<8x32xf32>
    %83 = arith.subf %81, %82 : vector<8x32xf32>
    %84 = vector.extract_strided_slice %76 {offsets = [0, 96], sizes = [8, 32], strides = [1, 1]} : vector<8x128xf32> to vector<8x32xf32>
    %85 = arith.mulf %78, %67 : vector<8x32xf32>
    %86 = arith.mulf %77, %83 : vector<8x32xf32>
    %87 = arith.addf %85, %86 : vector<8x32xf32>
    %88 = math.tanh %87 : vector<8x32xf32>
    %89 = arith.mulf %84, %88 : vector<8x32xf32>
    %cst_26 = arith.constant dense<0.000000e+00> : vector<8x128xf32>
    %90 = tpu.matmul %89, %1, %cst_26 {dimension_numbers = #tpu.dot_dimension_numbers<[1], [0], [0], [1], [0, 0, 1, 1], [], []>} : vector<8x32xf32>, vector<32x128xf32>, vector<8x128xf32> -> vector<8x128xf32>
    %91 = arith.addf %90, %7 : vector<8x128xf32>
    %92 = arith.negf %91 : vector<8x128xf32>
    %93 = math.exp %92 : vector<8x128xf32>
    %cst_27 = arith.constant 1.000000e+00 : f32
    %94 = vector.broadcast %cst_27 : f32 to vector<8x128xf32>
    %95 = arith.addf %94, %93 : vector<8x128xf32>
    %96 = arith.divf %94, %95 : vector<8x128xf32>
    %97 = vector.extract_strided_slice %96 {offsets = [0, 0], sizes = [8, 32], strides = [1, 1]} : vector<8x128xf32> to vector<8x32xf32>
    %98 = vector.extract_strided_slice %96 {offsets = [0, 32], sizes = [8, 32], strides = [1, 1]} : vector<8x128xf32> to vector<8x32xf32>
    %99 = vector.extract_strided_slice %96 {offsets = [0, 64], sizes = [8, 32], strides = [1, 1]} : vector<8x128xf32> to vector<8x32xf32>
    %cst_28 = arith.constant 2.000000e+00 : f32
    %100 = vector.broadcast %cst_28 : f32 to vector<8x32xf32>
    %101 = arith.mulf %100, %99 : vector<8x32xf32>
    %cst_29 = arith.constant 1.000000e+00 : f32
    %102 = vector.broadcast %cst_29 : f32 to vector<8x32xf32>
    %103 = arith.subf %101, %102 : vector<8x32xf32>
    %104 = vector.extract_strided_slice %96 {offsets = [0, 96], sizes = [8, 32], strides = [1, 1]} : vector<8x128xf32> to vector<8x32xf32>
    %105 = arith.mulf %98, %87 : vector<8x32xf32>
    %106 = arith.mulf %97, %103 : vector<8x32xf32>
    %107 = arith.addf %105, %106 : vector<8x32xf32>
    %108 = math.tanh %107 : vector<8x32xf32>
    %109 = arith.mulf %104, %108 : vector<8x32xf32>
    %cst_30 = arith.constant dense<0.000000e+00> : vector<8x128xf32>
    %110 = tpu.matmul %109, %1, %cst_30 {dimension_numbers = #tpu.dot_dimension_numbers<[1], [0], [0], [1], [0, 0, 1, 1], [], []>} : vector<8x32xf32>, vector<32x128xf32>, vector<8x128xf32> -> vector<8x128xf32>
    %111 = arith.addf %110, %7 : vector<8x128xf32>
    %112 = arith.negf %111 : vector<8x128xf32>
    %113 = math.exp %112 : vector<8x128xf32>
    %cst_31 = arith.constant 1.000000e+00 : f32
    %114 = vector.broadcast %cst_31 : f32 to vector<8x128xf32>
    %115 = arith.addf %114, %113 : vector<8x128xf32>
    %116 = arith.divf %114, %115 : vector<8x128xf32>
    %117 = vector.extract_strided_slice %116 {offsets = [0, 0], sizes = [8, 32], strides = [1, 1]} : vector<8x128xf32> to vector<8x32xf32>
    %118 = vector.extract_strided_slice %116 {offsets = [0, 32], sizes = [8, 32], strides = [1, 1]} : vector<8x128xf32> to vector<8x32xf32>
    %119 = vector.extract_strided_slice %116 {offsets = [0, 64], sizes = [8, 32], strides = [1, 1]} : vector<8x128xf32> to vector<8x32xf32>
    %cst_32 = arith.constant 2.000000e+00 : f32
    %120 = vector.broadcast %cst_32 : f32 to vector<8x32xf32>
    %121 = arith.mulf %120, %119 : vector<8x32xf32>
    %cst_33 = arith.constant 1.000000e+00 : f32
    %122 = vector.broadcast %cst_33 : f32 to vector<8x32xf32>
    %123 = arith.subf %121, %122 : vector<8x32xf32>
    %124 = vector.extract_strided_slice %116 {offsets = [0, 96], sizes = [8, 32], strides = [1, 1]} : vector<8x128xf32> to vector<8x32xf32>
    %125 = arith.mulf %118, %107 : vector<8x32xf32>
    %126 = arith.mulf %117, %123 : vector<8x32xf32>
    %127 = arith.addf %125, %126 : vector<8x32xf32>
    %128 = math.tanh %127 : vector<8x32xf32>
    %129 = arith.mulf %124, %128 : vector<8x32xf32>
    %cst_34 = arith.constant dense<0.000000e+00> : vector<8x128xf32>
    %130 = tpu.matmul %129, %1, %cst_34 {dimension_numbers = #tpu.dot_dimension_numbers<[1], [0], [0], [1], [0, 0, 1, 1], [], []>} : vector<8x32xf32>, vector<32x128xf32>, vector<8x128xf32> -> vector<8x128xf32>
    %131 = arith.addf %130, %7 : vector<8x128xf32>
    %132 = arith.negf %131 : vector<8x128xf32>
    %133 = math.exp %132 : vector<8x128xf32>
    %cst_35 = arith.constant 1.000000e+00 : f32
    %134 = vector.broadcast %cst_35 : f32 to vector<8x128xf32>
    %135 = arith.addf %134, %133 : vector<8x128xf32>
    %136 = arith.divf %134, %135 : vector<8x128xf32>
    %137 = vector.extract_strided_slice %136 {offsets = [0, 0], sizes = [8, 32], strides = [1, 1]} : vector<8x128xf32> to vector<8x32xf32>
    %138 = vector.extract_strided_slice %136 {offsets = [0, 32], sizes = [8, 32], strides = [1, 1]} : vector<8x128xf32> to vector<8x32xf32>
    %139 = vector.extract_strided_slice %136 {offsets = [0, 64], sizes = [8, 32], strides = [1, 1]} : vector<8x128xf32> to vector<8x32xf32>
    %cst_36 = arith.constant 2.000000e+00 : f32
    %140 = vector.broadcast %cst_36 : f32 to vector<8x32xf32>
    %141 = arith.mulf %140, %139 : vector<8x32xf32>
    %cst_37 = arith.constant 1.000000e+00 : f32
    %142 = vector.broadcast %cst_37 : f32 to vector<8x32xf32>
    %143 = arith.subf %141, %142 : vector<8x32xf32>
    %144 = vector.extract_strided_slice %136 {offsets = [0, 96], sizes = [8, 32], strides = [1, 1]} : vector<8x128xf32> to vector<8x32xf32>
    %145 = arith.mulf %138, %127 : vector<8x32xf32>
    %146 = arith.mulf %137, %143 : vector<8x32xf32>
    %147 = arith.addf %145, %146 : vector<8x32xf32>
    %148 = math.tanh %147 : vector<8x32xf32>
    %149 = arith.mulf %144, %148 : vector<8x32xf32>
    %cst_38 = arith.constant dense<0.000000e+00> : vector<8x128xf32>
    %150 = tpu.matmul %149, %1, %cst_38 {dimension_numbers = #tpu.dot_dimension_numbers<[1], [0], [0], [1], [0, 0, 1, 1], [], []>} : vector<8x32xf32>, vector<32x128xf32>, vector<8x128xf32> -> vector<8x128xf32>
    %151 = arith.addf %150, %7 : vector<8x128xf32>
    %152 = arith.negf %151 : vector<8x128xf32>
    %153 = math.exp %152 : vector<8x128xf32>
    %cst_39 = arith.constant 1.000000e+00 : f32
    %154 = vector.broadcast %cst_39 : f32 to vector<8x128xf32>
    %155 = arith.addf %154, %153 : vector<8x128xf32>
    %156 = arith.divf %154, %155 : vector<8x128xf32>
    %157 = vector.extract_strided_slice %156 {offsets = [0, 0], sizes = [8, 32], strides = [1, 1]} : vector<8x128xf32> to vector<8x32xf32>
    %158 = vector.extract_strided_slice %156 {offsets = [0, 32], sizes = [8, 32], strides = [1, 1]} : vector<8x128xf32> to vector<8x32xf32>
    %159 = vector.extract_strided_slice %156 {offsets = [0, 64], sizes = [8, 32], strides = [1, 1]} : vector<8x128xf32> to vector<8x32xf32>
    %cst_40 = arith.constant 2.000000e+00 : f32
    %160 = vector.broadcast %cst_40 : f32 to vector<8x32xf32>
    %161 = arith.mulf %160, %159 : vector<8x32xf32>
    %cst_41 = arith.constant 1.000000e+00 : f32
    %162 = vector.broadcast %cst_41 : f32 to vector<8x32xf32>
    %163 = arith.subf %161, %162 : vector<8x32xf32>
    %164 = vector.extract_strided_slice %156 {offsets = [0, 96], sizes = [8, 32], strides = [1, 1]} : vector<8x128xf32> to vector<8x32xf32>
    %165 = arith.mulf %158, %147 : vector<8x32xf32>
    %166 = arith.mulf %157, %163 : vector<8x32xf32>
    %167 = arith.addf %165, %166 : vector<8x32xf32>
    %168 = math.tanh %167 : vector<8x32xf32>
    %169 = arith.mulf %164, %168 : vector<8x32xf32>
    %170 = tpu.concatenate %29, %49, %69, %89, %109, %129, %149, %169 in 1 : vector<8x32xf32>, vector<8x32xf32>, vector<8x32xf32>, vector<8x32xf32>, vector<8x32xf32>, vector<8x32xf32>, vector<8x32xf32>, vector<8x32xf32> -> vector<8x256xf32>
    %c0_42 = arith.constant 0 : index
    %c0_43 = arith.constant 0 : index
    %171 = vector.load %arg6[%c0_42, %c0_43] : memref<256x128xf32, #tpu.memory_space<vmem>>, vector<256x128xf32>
    %cst_44 = arith.constant dense<0.000000e+00> : vector<8x128xf32>
    %172 = tpu.matmul %170, %171, %cst_44 {dimension_numbers = #tpu.dot_dimension_numbers<[1], [0], [0], [1], [0, 0, 1, 1], [], []>} : vector<8x256xf32>, vector<256x128xf32>, vector<8x128xf32> -> vector<8x128xf32>
    %c0_45 = arith.constant 0 : index
    %c0_46 = arith.constant 0 : index
    %173 = vector.load %arg7[%c0_45, %c0_46] : memref<1x128xf32, #tpu.memory_space<vmem>>, vector<1x128xf32>
    %174 = vector.shape_cast %173 : vector<1x128xf32> to vector<1x128xf32>
    %175 = vector.broadcast %174 : vector<1x128xf32> to vector<8x128xf32>
    %176 = arith.addf %172, %175 : vector<8x128xf32>
    %cst_47 = arith.constant dense<0.000000e+00> : vector<128xf32>
    %177 = vector.multi_reduction <add>, %176, %cst_47 [0] : vector<8x128xf32> to vector<128xf32>
    %178 = vector.shape_cast %177 : vector<128xf32> to vector<1x128xf32>
    %cst_48 = arith.constant 8.000000e+00 : f32
    %179 = vector.broadcast %cst_48 : f32 to vector<1x128xf32>
    %180 = arith.divf %178, %179 : vector<1x128xf32>
    %181 = vector.broadcast %180 : vector<1x128xf32> to vector<8x128xf32>
    %182 = arith.subf %176, %181 : vector<8x128xf32>
    %183 = arith.mulf %182, %182 : vector<8x128xf32>
    %cst_49 = arith.constant dense<0.000000e+00> : vector<128xf32>
    %184 = vector.multi_reduction <add>, %183, %cst_49 [0] : vector<8x128xf32> to vector<128xf32>
    %185 = vector.shape_cast %184 : vector<128xf32> to vector<1x128xf32>
    %cst_50 = arith.constant 8.000000e+00 : f32
    %186 = vector.broadcast %cst_50 : f32 to vector<1x128xf32>
    %187 = arith.divf %185, %186 : vector<1x128xf32>
    %188 = vector.broadcast %180 : vector<1x128xf32> to vector<8x128xf32>
    %189 = arith.subf %176, %188 : vector<8x128xf32>
    %cst_51 = arith.constant 9.99999974E-6 : f32
    %190 = vector.broadcast %cst_51 : f32 to vector<1x128xf32>
    %191 = arith.addf %187, %190 : vector<1x128xf32>
    %192 = math.rsqrt %191 : vector<1x128xf32>
    %193 = vector.broadcast %192 : vector<1x128xf32> to vector<8x128xf32>
    %194 = arith.mulf %189, %193 : vector<8x128xf32>
    %c0_52 = arith.constant 0 : index
    %c0_53 = arith.constant 0 : index
    %195 = vector.load %arg8[%c0_52, %c0_53] : memref<8x128xf32, #tpu.memory_space<vmem>>, vector<8x128xf32>
    tpu.vector_store %arg8[%c0_52, %c0_53], %194 {strides = array<i32>} : memref<8x128xf32, #tpu.memory_space<vmem>>, vector<8x128xf32>,
    return
  }
}

</mosaic_0001>

<llo_original>
// kernel: tpu_custom_call.1
$region0: #{tpu_custom_call.1}
  #allocation0 [shape = 'u32[]', space=smem, size = 0x4, offset = 0x4, fixed_abs, tag = 'smem constant byte address 0x4 - core index']
  #allocation1 [shape = 'u32[144,128]{1,0:T(1,128)}', space=vmem, size = 0x12000, scoped, tag = 'internal scratch']
  %s0 = inlined_call_operand.hbm [shape: f32[8,48], index: 0, kind: input, shape index: {}]
  %s1 = inlined_call_operand.hbm [shape: f32[8,32], index: 1, kind: input, shape index: {}]
  %s2 = inlined_call_operand.hbm [shape: f32[48,128], index: 2, kind: input, shape index: {}]
  %s3 = inlined_call_operand.vmem [shape: f32[1,128], index: 3, kind: input, shape index: {}]
  %s4 = inlined_call_operand.hbm [shape: f32[32,128], index: 4, kind: input, shape index: {}]
  %s5 = inlined_call_operand.vmem [shape: f32[1,128], index: 5, kind: input, shape index: {}]
  %s6 = inlined_call_operand.hbm [shape: f32[256,128], index: 6, kind: input, shape index: {}]
  %s7 = inlined_call_operand.vmem [shape: f32[1,128], index: 7, kind: input, shape index: {}]
  %s8 = inlined_call_operand.hbm [shape: f32[8,128], index: 8, kind: output, shape index: {}]
  %s9 = sld [smem:[#allocation0]]
  $region62: #{tpu_custom_call.1} parent=0
    _
  %s11 = ssub.s32 1, %s9
  %s12 = scalar_select 0, %s11, %s9
  $region1: #{tpu_custom_call.1} parent=0
    #allocation2 [shape = 'u8[4096]{0}', space=vmem, size = 0x1000, scoped, tag = 'input window, operand 0, single buffered']
    #allocation3 [shape = 's32[1]{0}', space=sflag, size = 0x4, scoped, tag = 'scoped memory for tpu_custom_call.1']
    #allocation4 [shape = 's32[1]{0}', space=sflag, size = 0x4, scoped, tag = 'scoped memory for tpu_custom_call.1']
    #allocation5 [shape = 'u8[4096]{0}', space=vmem, size = 0x1000, scoped, tag = 'input window, operand 1, single buffered']
    #allocation6 [shape = 's32[1]{0}', space=sflag, size = 0x4, scoped, tag = 'scoped memory for tpu_custom_call.1']
    #allocation7 [shape = 'u8[24576]{0}', space=vmem, size = 0x6000, scoped, tag = 'input window, operand 2, single buffered']
    #allocation8 [shape = 'u8[16384]{0}', space=vmem, size = 0x4000, scoped, tag = 'input window, operand 4, single buffered']
    #allocation9 [shape = 's32[1]{0}', space=sflag, size = 0x4, scoped, tag = 'scoped memory for tpu_custom_call.1']
    #allocation10 [shape = 'u8[131072]{0}', space=vmem, size = 0x20000, scoped, tag = 'input window, operand 6, single buffered']
    #allocation11 [shape = 'u8[4096]{0}', space=vmem, size = 0x1000, scoped, tag = 'output window, operand 0, single buffered']
    %13 = vsyncpa [#allocation3], 0
    %14 = vsyncpa [#allocation6], 0
    %15 = vsyncpa [#allocation9], 0
    %16 = vsyncpa [#allocation4], 0
    // Predicated region
    $region2: #{tpu_custom_call.1} parent=1 // pred_check
      _
    $region3: #{tpu_custom_call.1} parent=1 // pred_check_branch
      %18 = sbr.rel (0) target = $region5
    $region4: #{tpu_custom_call.1} parent=1 // pred_region
      %s20 = ssub.s32 128, 128
      %21 = vsyncadd [#allocation3], %s20
      %s23 = sshll.u32 [#allocation2], 4
      %s24 = int_to_ptr.vmem [resolvable:$true] %s23
      %26 = dma.hbm_to_vmem [thread:$0]  %s0, 128, %s24, [#allocation3]
    $region5: #{tpu_custom_call.1} parent=1 // pred_fallthru
      _
    // Predicated region
    $region6: #{tpu_custom_call.1} parent=1 // pred_check
      _
    $region7: #{tpu_custom_call.1} parent=1 // pred_check_branch
      %28 = sbr.rel (0) target = $region9
    $region8: #{tpu_custom_call.1} parent=1 // pred_region
      %s30 = ssub.s32 128, 128
      %31 = vsyncadd [#allocation6], %s30
      %s33 = sshll.u32 [#allocation5], 4
      %s34 = int_to_ptr.vmem [resolvable:$true] %s33
      %36 = dma.hbm_to_vmem [thread:$0]  %s1, 128, %s34, [#allocation6]
    $region9: #{tpu_custom_call.1} parent=1 // pred_fallthru
      _
    // Predicated region
    $region10: #{tpu_custom_call.1} parent=1 // pred_check
      _
    $region11: #{tpu_custom_call.1} parent=1 // pred_check_branch
      %38 = sbr.rel (0) target = $region13
    $region12: #{tpu_custom_call.1} parent=1 // pred_region
      %s40 = ssub.s32 768, 768
      %41 = vsyncadd [#allocation6], %s40
      %s42 = sshll.u32 [#allocation7], 4
      %s43 = int_to_ptr.vmem [resolvable:$true] %s42
      %48 = dma.hbm_to_vmem [thread:$0]  %s2, 768, %s43, [#allocation6], 128, 128, 8
    $region13: #{tpu_custom_call.1} parent=1 // pred_fallthru
      _
    // Predicated region
    $region14: #{tpu_custom_call.1} parent=1 // pred_check
      _
    $region15: #{tpu_custom_call.1} parent=1 // pred_check_branch
      %50 = sbr.rel (0) target = $region17
    $region16: #{tpu_custom_call.1} parent=1 // pred_region
      _
    $region17: #{tpu_custom_call.1} parent=1 // pred_fallthru
      _
    // Predicated region
    $region18: #{tpu_custom_call.1} parent=1 // pred_check
      _
    $region19: #{tpu_custom_call.1} parent=1 // pred_check_branch
      %52 = sbr.rel (0) target = $region21
    $region20: #{tpu_custom_call.1} parent=1 // pred_region
      %s54 = ssub.s32 512, 512
      %55 = vsyncadd [#allocation9], %s54
      %s56 = sshll.u32 [#allocation8], 4
      %s57 = int_to_ptr.vmem [resolvable:$true] %s56
      %62 = dma.hbm_to_vmem [thread:$0]  %s4, 512, %s57, [#allocation9], 128, 128, 8
    $region21: #{tpu_custom_call.1} parent=1 // pred_fallthru
      _
    // Predicated region
    $region22: #{tpu_custom_call.1} parent=1 // pred_check
      _
    $region23: #{tpu_custom_call.1} parent=1 // pred_check_branch
      %64 = sbr.rel (0) target = $region25
    $region24: #{tpu_custom_call.1} parent=1 // pred_region
      _
    $region25: #{tpu_custom_call.1} parent=1 // pred_fallthru
      _
    // Predicated region
    $region26: #{tpu_custom_call.1} parent=1 // pred_check
      _
    $region27: #{tpu_custom_call.1} parent=1 // pred_check_branch
      %66 = sbr.rel (0) target = $region29
    $region28: #{tpu_custom_call.1} parent=1 // pred_region
      %s68 = ssub.s32 4096, 4096
      %69 = vsyncadd [#allocation9], %s68
      %s70 = sshll.u32 [#allocation10], 4
      %s71 = int_to_ptr.vmem [resolvable:$true] %s70
      %76 = dma.hbm_to_vmem [thread:$0]  %s6, 4096, %s71, [#allocation9], 128, 128, 8
    $region29: #{tpu_custom_call.1} parent=1 // pred_fallthru
      _
    // Predicated region
    $region30: #{tpu_custom_call.1} parent=1 // pred_check
      _
    $region31: #{tpu_custom_call.1} parent=1 // pred_check_branch
      %78 = sbr.rel (0) target = $region33
    $region32: #{tpu_custom_call.1} parent=1 // pred_region
      _
    $region33: #{tpu_custom_call.1} parent=1 // pred_fallthru
      _
    // Predicated region
    $region34: #{tpu_custom_call.1} parent=1 // pred_check
      _
    $region35: #{tpu_custom_call.1} parent=1 // pred_check_branch
      %80 = sbr.rel (0) target = $region37
    $region36: #{tpu_custom_call.1} parent=1 // pred_region
      %81 = dma.done [#allocation3], 128
    $region37: #{tpu_custom_call.1} parent=1 // pred_fallthru
      _
    // Predicated region
    $region38: #{tpu_custom_call.1} parent=1 // pred_check
      _
    $region39: #{tpu_custom_call.1} parent=1 // pred_check_branch
      %83 = sbr.rel (0) target = $region41
    $region40: #{tpu_custom_call.1} parent=1 // pred_region
      %84 = dma.done [#allocation6], 128
    $region41: #{tpu_custom_call.1} parent=1 // pred_fallthru
      _
    // Predicated region
    $region42: #{tpu_custom_call.1} parent=1 // pred_check
      _
    $region43: #{tpu_custom_call.1} parent=1 // pred_check_branch
      %86 = sbr.rel (0) target = $region45
    $region44: #{tpu_custom_call.1} parent=1 // pred_region
      %87 = dma.done [#allocation6], 768
    $region45: #{tpu_custom_call.1} parent=1 // pred_fallthru
      _
    // Predicated region
    $region46: #{tpu_custom_call.1} parent=1 // pred_check
      _
    $region47: #{tpu_custom_call.1} parent=1 // pred_check_branch
      %89 = sbr.rel (0) target = $region49
    $region48: #{tpu_custom_call.1} parent=1 // pred_region
      %90 = dma.done [#allocation9], 512
    $region49: #{tpu_custom_call.1} parent=1 // pred_fallthru
      _
    // Predicated region
    $region50: #{tpu_custom_call.1} parent=1 // pred_check
      _
    $region51: #{tpu_custom_call.1} parent=1 // pred_check_branch
      %92 = sbr.rel (0) target = $region53
    $region52: #{tpu_custom_call.1} parent=1 // pred_region
      %93 = dma.done [#allocation9], 4096
    $region53: #{tpu_custom_call.1} parent=1 // pred_fallthru
      _
    %v94 = vld [vmem:[#allocation7] sm:$0xff]
    %v95 = vld [vmem:[#allocation7 + $0x8] sm:$0xff]
    %v96 = vld [vmem:[#allocation7 + $0x10] sm:$0xff]
    %v97 = vld [vmem:[#allocation7 + $0x18] sm:$0xff]
    %v98 = vld [vmem:[#allocation7 + $0x20] sm:$0xff]
    %v99 = vld [vmem:[#allocation7 + $0x28] sm:$0xff]
    %v100 = vld [vmem:[#allocation8] sm:$0xff]
    %v101 = vld [vmem:[#allocation8 + $0x8] sm:$0xff]
    %v102 = vld [vmem:[#allocation8 + $0x10] sm:$0xff]
    %v103 = vld [vmem:[#allocation8 + $0x18] sm:$0xff]
    %v104 = vld [vmem:[%s3] sm:$0x1]
    %v106 = vlaneseq
    %v107 = vshrl.u32 %v106, 7
    %v108 = vsub.s32 0, %v107
    %v109 = vrot.slane %v104, %v108
    %v111 = vld [vmem:[%s5] sm:$0x1]
    %v113 = vlaneseq
    %v114 = vshrl.u32 %v113, 7
    %v115 = vsub.s32 0, %v114
    %v116 = vrot.slane %v111, %v115
    %v118 = vld [vmem:[#allocation5] sm:$0xff]
    %v119 = vld [vmem:[#allocation2] sm:$0xff]
    %vm120 = vcmask 392192
    %v122 = vsel %vm120, %v119, 0
    %124 = vmatprep.subr.mxu0 0.0
    %125 = vmatpush1.msra.mxu0 %v94
    %126 = vmatprep.subr.mxu0 0.0
    %127 = vmatpush1.msra.mxu0 %v95
    %128 = vmatprep.subr.mxu0 0.0
    %129 = vmatpush1.msra.mxu0 %v96
    %130 = vmatprep.subr.mxu0 0.0
    %131 = vmatpush1.msra.mxu0 %v97
    %132 = vmatprep.subr.mxu0 0.0
    %133 = vmatpush1.msra.mxu0 %v98
    %134 = vmatprep.subr.mxu0 0.0
    %135 = vmatpush1.msra.mxu0 %v99
    %136 = vmatprep.subr.mxu0 0.0
    %137 = vmatpush1.msra.mxu0 0.0
    %138 = vmatprep.subr.mxu0 0.0
    %139 = vmatpush1.msra.mxu0 0.0
    %140 = vmatprep.subr.mxu0 0.0
    %141 = vmatpush1.msra.mxu0 0.0
    %142 = vmatprep.subr.mxu0 0.0
    %143 = vmatpush1.msra.mxu0 0.0
    %144 = vmatprep.subr.mxu0 0.0
    %145 = vmatpush1.msra.mxu0 0.0
    %146 = vmatprep.subr.mxu0 0.0
    %147 = vmatpush1.msra.mxu0 0.0
    %148 = vmatprep.subr.mxu0 0.0
    %149 = vmatpush1.msra.mxu0 0.0
    %150 = vmatprep.subr.mxu0 0.0
    %151 = vmatpush1.msra.mxu0 0.0
    %152 = vmatprep.subr.mxu0 0.0
    %153 = vmatpush1.msra.mxu0 0.0
    %154 = vmatprep.subr.mxu0 0.0
    %155 = vmatpush1.msra.mxu0 0.0
    %156 = vmatprep.subr.mxu0 0.0
    %157 = vmatpush1.msra.mxu0 0.0
    %158 = vmatprep.subr.mxu0 0.0
    %159 = vmatpush1.msra.mxu0 0.0
    %160 = vmatprep.subr.mxu0 0.0
    %161 = vmatpush1.msra.mxu0 0.0
    %162 = vmatprep.subr.mxu0 0.0
    %163 = vmatpush1.msra.mxu0 0.0
    %164 = vmatprep.subr.mxu0 0.0
    %165 = vmatpush1.msra.mxu0 0.0
    %166 = vmatprep.subr.mxu0 0.0
    %167 = vmatpush1.msra.mxu0 0.0
    %168 = vmatprep.subr.mxu0 0.0
    %169 = vmatpush1.msra.mxu0 0.0
    %170 = vmatprep.subr.mxu0 0.0
    %171 = vmatpush1.msra.mxu0 0.0
    %172 = vmatprep.subr.mxu0 0.0
    %173 = vmatpush1.msra.mxu0 0.0
    %174 = vmatprep.subr.mxu0 0.0
    %175 = vmatpush1.msra.mxu0 0.0
    %176 = vmatprep.subr.mxu0 0.0
    %177 = vmatpush1.msra.mxu0 0.0
    %178 = vmatprep.subr.mxu0 0.0
    %179 = vmatpush1.msra.mxu0 0.0
    %180 = vmatprep.subr.mxu0 0.0
    %181 = vmatpush1.msra.mxu0 0.0
    %182 = vmatprep.subr.mxu0 0.0
    %183 = vmatpush1.msra.mxu0 0.0
    %184 = vmatprep.subr.mxu0 0.0
    %185 = vmatpush1.msra.mxu0 0.0
    %186 = vmatprep.subr.mxu0 0.0
    %187 = vmatpush1.msra.mxu0 0.0
    %188 = vmatprep.mubr.f32.mxu0 0.0
    %189 = vmatmul.mubr.f32.gmra.mrb[0].mxu0 %v122
    %v190 = vpop.f32.mrb[0].mxu0
    %v191 = vadd.f32 %v109, %v190
    %v192 = vpop.f32.mrb[0].mxu0
    %193 = vdwg.mxu0
    %v194 = vxor.u32 %v191, 2147483648
    %v195 = vmul.f32 %v194, 1.442695
    %v196 = vpow.pop %v195
    %v197 = vadd.f32 %v196, 1.0
    %v198 = vrcp.pop %v197
    %v199 = vmul.f32 1.0, %v198
    %v200 = vmul.f32 %v199, 2.0
    %v201 = vsub.f32 %v200, 1.0
    %203 = vrot.lane.b32.xlu0 %v118, 32
    %v204 = vpop.permute.xlu0 %203
    %v206 = vmul.f32 %v199, %v204
    %208 = vrot.lane.b32.xlu0 %v201, 64
    %v209 = vpop.permute.xlu0 %208
    %v211 = vmul.f32 %v199, %v209
    %213 = vrot.lane.b32.xlu0 %v211, 32
    %v214 = vpop.permute.xlu0 %213
    %v216 = vadd.f32 %v206, %v214
    %v217 = vtanh.pop %v216
    %219 = vrot.lane.b32.xlu0 %v217, 64
    %v220 = vpop.permute.xlu0 %219
    %v222 = vmul.f32 %v199, %v220
    %224 = vrot.lane.b32.xlu0 %v222, 32
    %v225 = vpop.permute.xlu0 %224
    %vm226 = vcmask 261120
    %v227 = vsel %vm226, %v225, 0
    %229 = vmatprep.subr.mxu0 0.0
    %230 = vmatpush1.msra.mxu0 %v100
    %231 = vmatprep.subr.mxu0 0.0
    %232 = vmatpush1.msra.mxu0 %v101
    %233 = vmatprep.subr.mxu0 0.0
    %234 = vmatpush1.msra.mxu0 %v102
    %235 = vmatprep.subr.mxu0 0.0
    %236 = vmatpush1.msra.mxu0 %v103
    %237 = vmatprep.subr.mxu0 0.0
    %238 = vmatpush1.msra.mxu0 0.0
    %239 = vmatprep.subr.mxu0 0.0
    %240 = vmatpush1.msra.mxu0 0.0
    %241 = vmatprep.subr.mxu0 0.0
    %242 = vmatpush1.msra.mxu0 0.0
    %243 = vmatprep.subr.mxu0 0.0
    %244 = vmatpush1.msra.mxu0 0.0
    %245 = vmatprep.subr.mxu0 0.0
    %246 = vmatpush1.msra.mxu0 0.0
    %247 = vmatprep.subr.mxu0 0.0
    %248 = vmatpush1.msra.mxu0 0.0
    %249 = vmatprep.subr.mxu0 0.0
    %250 = vmatpush1.msra.mxu0 0.0
    %251 = vmatprep.subr.mxu0 0.0
    %252 = vmatpush1.msra.mxu0 0.0
    %253 = vmatprep.subr.mxu0 0.0
    %254 = vmatpush1.msra.mxu0 0.0
    %255 = vmatprep.subr.mxu0 0.0
    %256 = vmatpush1.msra.mxu0 0.0
    %257 = vmatprep.subr.mxu0 0.0
    %258 = vmatpush1.msra.mxu0 0.0
    %259 = vmatprep.subr.mxu0 0.0
    %260 = vmatpush1.msra.mxu0 0.0
    %261 = vmatprep.subr.mxu0 0.0
    %262 = vmatpush1.msra.mxu0 0.0
    %263 = vmatprep.subr.mxu0 0.0
    %264 = vmatpush1.msra.mxu0 0.0
    %265 = vmatprep.subr.mxu0 0.0
    %266 = vmatpush1.msra.mxu0 0.0
    %267 = vmatprep.subr.mxu0 0.0
    %268 = vmatpush1.msra.mxu0 0.0
    %269 = vmatprep.subr.mxu0 0.0
    %270 = vmatpush1.msra.mxu0 0.0
    %271 = vmatprep.subr.mxu0 0.0
    %272 = vmatpush1.msra.mxu0 0.0
    %273 = vmatprep.subr.mxu0 0.0
    %274 = vmatpush1.msra.mxu0 0.0
    %275 = vmatprep.subr.mxu0 0.0
    %276 = vmatpush1.msra.mxu0 0.0
    %277 = vmatprep.subr.mxu0 0.0
    %278 = vmatpush1.msra.mxu0 0.0
    %279 = vmatprep.subr.mxu0 0.0
    %280 = vmatpush1.msra.mxu0 0.0
    %281 = vmatprep.subr.mxu0 0.0
    %282 = vmatpush1.msra.mxu0 0.0
    %283 = vmatprep.subr.mxu0 0.0
    %284 = vmatpush1.msra.mxu0 0.0
    %285 = vmatprep.subr.mxu0 0.0
    %286 = vmatpush1.msra.mxu0 0.0
    %287 = vmatprep.subr.mxu0 0.0
    %288 = vmatpush1.msra.mxu0 0.0
    %289 = vmatprep.subr.mxu0 0.0
    %290 = vmatpush1.msra.mxu0 0.0
    %291 = vmatprep.subr.mxu0 0.0
    %292 = vmatpush1.msra.mxu0 0.0
    %293 = vmatprep.mubr.f32.mxu0 0.0
    %294 = vmatmul.mubr.f32.gmra.mrb[0].mxu0 %v227
    %v295 = vpop.f32.mrb[0].mxu0
    %v296 = vadd.f32 %v116, %v295
    %v297 = vpop.f32.mrb[0].mxu0
    %298 = vdwg.mxu0
    %v299 = vxor.u32 %v296, 2147483648
    %v300 = vmul.f32 %v299, 1.442695
    %v301 = vpow.pop %v300
    %v302 = vadd.f32 %v301, 1.0
    %v303 = vrcp.pop %v302
    %v304 = vmul.f32 1.0, %v303
    %v305 = vmul.f32 %v304, 2.0
    %v306 = vsub.f32 %v305, 1.0
    %v307 = vmul.f32 %v304, %v216
    %309 = vrot.lane.b32.xlu0 %v306, 64
    %v310 = vpop.permute.xlu0 %309
    %v312 = vmul.f32 %v304, %v310
    %314 = vrot.lane.b32.xlu0 %v312, 32
    %v315 = vpop.permute.xlu0 %314
    %v317 = vadd.f32 %v307, %v315
    %v318 = vtanh.pop %v317
    %320 = vrot.lane.b32.xlu0 %v318, 64
    %v321 = vpop.permute.xlu0 %320
    %v323 = vmul.f32 %v304, %v321
    %325 = vrot.lane.b32.xlu0 %v323, 32
    %v326 = vpop.permute.xlu0 %325
    %v327 = vsel %vm226, %v326, 0
    %329 = vmatprep.subr.mxu0 0.0
    %330 = vmatpush1.msra.mxu0 %v100
    %331 = vmatprep.subr.mxu0 0.0
    %332 = vmatpush1.msra.mxu0 %v101
    %333 = vmatprep.subr.mxu0 0.0
    %334 = vmatpush1.msra.mxu0 %v102
    %335 = vmatprep.subr.mxu0 0.0
    %336 = vmatpush1.msra.mxu0 %v103
    %337 = vmatprep.subr.mxu0 0.0
    %338 = vmatpush1.msra.mxu0 0.0
    %339 = vmatprep.subr.mxu0 0.0
    %340 = vmatpush1.msra.mxu0 0.0
    %341 = vmatprep.subr.mxu0 0.0
    %342 = vmatpush1.msra.mxu0 0.0
    %343 = vmatprep.subr.mxu0 0.0
    %344 = vmatpush1.msra.mxu0 0.0
    %345 = vmatprep.subr.mxu0 0.0
    %346 = vmatpush1.msra.mxu0 0.0
    %347 = vmatprep.subr.mxu0 0.0
    %348 = vmatpush1.msra.mxu0 0.0
    %349 = vmatprep.subr.mxu0 0.0
    %350 = vmatpush1.msra.mxu0 0.0
    %351 = vmatprep.subr.mxu0 0.0
    %352 = vmatpush1.msra.mxu0 0.0
    %353 = vmatprep.subr.mxu0 0.0
    %354 = vmatpush1.msra.mxu0 0.0
    %355 = vmatprep.subr.mxu0 0.0
    %356 = vmatpush1.msra.mxu0 0.0
    %357 = vmatprep.subr.mxu0 0.0
    %358 = vmatpush1.msra.mxu0 0.0
    %359 = vmatprep.subr.mxu0 0.0
    %360 = vmatpush1.msra.mxu0 0.0
    %361 = vmatprep.subr.mxu0 0.0
    %362 = vmatpush1.msra.mxu0 0.0
    %363 = vmatprep.subr.mxu0 0.0
    %364 = vmatpush1.msra.mxu0 0.0
    %365 = vmatprep.subr.mxu0 0.0
    %366 = vmatpush1.msra.mxu0 0.0
    %367 = vmatprep.subr.mxu0 0.0
    %368 = vmatpush1.msra.mxu0 0.0
    %369 = vmatprep.subr.mxu0 0.0
    %370 = vmatpush1.msra.mxu0 0.0
    %371 = vmatprep.subr.mxu0 0.0
    %372 = vmatpush1.msra.mxu0 0.0
    %373 = vmatprep.subr.mxu0 0.0
    %374 = vmatpush1.msra.mxu0 0.0
    %375 = vmatprep.subr.mxu0 0.0
    %376 = vmatpush1.msra.mxu0 0.0
    %377 = vmatprep.subr.mxu0 0.0
    %378 = vmatpush1.msra.mxu0 0.0
    %379 = vmatprep.subr.mxu0 0.0
    %380 = vmatpush1.msra.mxu0 0.0
    %381 = vmatprep.subr.mxu0 0.0
    %382 = vmatpush1.msra.mxu0 0.0
    %383 = vmatprep.subr.mxu0 0.0
    %384 = vmatpush1.msra.mxu0 0.0
    %385 = vmatprep.subr.mxu0 0.0
    %386 = vmatpush1.msra.mxu0 0.0
    %387 = vmatprep.subr.mxu0 0.0
    %388 = vmatpush1.msra.mxu0 0.0
    %389 = vmatprep.subr.mxu0 0.0
    %390 = vmatpush1.msra.mxu0 0.0
    %391 = vmatprep.subr.mxu0 0.0
    %392 = vmatpush1.msra.mxu0 0.0
    %393 = vmatprep.mubr.f32.mxu0 0.0
    %394 = vmatmul.mubr.f32.gmra.mrb[0].mxu0 %v327
    %v395 = vpop.f32.mrb[0].mxu0
    %v396 = vadd.f32 %v116, %v395
    %v397 = vpop.f32.mrb[0].mxu0
    %398 = vdwg.mxu0
    %v399 = vxor.u32 %v396, 2147483648
    %v400 = vmul.f32 %v399, 1.442695
    %v401 = vpow.pop %v400
    %v402 = vadd.f32 %v401, 1.0
    %v403 = vrcp.pop %v402
    %v404 = vmul.f32 1.0, %v403
    %v405 = vmul.f32 %v404, 2.0
    %v406 = vsub.f32 %v405, 1.0
    %v407 = vmul.f32 %v404, %v317
    %409 = vrot.lane.b32.xlu0 %v406, 64
    %v410 = vpop.permute.xlu0 %409
    %v412 = vmul.f32 %v404, %v410
    %414 = vrot.lane.b32.xlu0 %v412, 32
    %v415 = vpop.permute.xlu0 %414
    %v417 = vadd.f32 %v407, %v415
    %v418 = vtanh.pop %v417
    %420 = vrot.lane.b32.xlu0 %v418, 64
    %v421 = vpop.permute.xlu0 %420
    %v423 = vmul.f32 %v404, %v421
    %425 = vrot.lane.b32.xlu0 %v423, 32
    %v426 = vpop.permute.xlu0 %425
    %v427 = vsel %vm226, %v426, 0
    %429 = vmatprep.subr.mxu0 0.0
    %430 = vmatpush1.msra.mxu0 %v100
    %431 = vmatprep.subr.mxu0 0.0
    %432 = vmatpush1.msra.mxu0 %v101
    %433 = vmatprep.subr.mxu0 0.0
    %434 = vmatpush1.msra.mxu0 %v102
    %435 = vmatprep.subr.mxu0 0.0
    %436 = vmatpush1.msra.mxu0 %v103
    %437 = vmatprep.subr.mxu0 0.0
    %438 = vmatpush1.msra.mxu0 0.0
    %439 = vmatprep.subr.mxu0 0.0
    %440 = vmatpush1.msra.mxu0 0.0
    %441 = vmatprep.subr.mxu0 0.0
    %442 = vmatpush1.msra.mxu0 0.0
    %443 = vmatprep.subr.mxu0 0.0
    %444 = vmatpush1.msra.mxu0 0.0
    %445 = vmatprep.subr.mxu0 0.0
    %446 = vmatpush1.msra.mxu0 0.0
    %447 = vmatprep.subr.mxu0 0.0
    %448 = vmatpush1.msra.mxu0 0.0
    %449 = vmatprep.subr.mxu0 0.0
    %450 = vmatpush1.msra.mxu0 0.0
    %451 = vmatprep.subr.mxu0 0.0
    %452 = vmatpush1.msra.mxu0 0.0
    %453 = vmatprep.subr.mxu0 0.0
    %454 = vmatpush1.msra.mxu0 0.0
    %455 = vmatprep.subr.mxu0 0.0
    %456 = vmatpush1.msra.mxu0 0.0
    %457 = vmatprep.subr.mxu0 0.0
    %458 = vmatpush1.msra.mxu0 0.0
    %459 = vmatprep.subr.mxu0 0.0
    %460 = vmatpush1.msra.mxu0 0.0
    %461 = vmatprep.subr.mxu0 0.0
    %462 = vmatpush1.msra.mxu0 0.0
    %463 = vmatprep.subr.mxu0 0.0
    %464 = vmatpush1.msra.mxu0 0.0
    %465 = vmatprep.subr.mxu0 0.0
    %466 = vmatpush1.msra.mxu0 0.0
    %467 = vmatprep.subr.mxu0 0.0
    %468 = vmatpush1.msra.mxu0 0.0
    %469 = vmatprep.subr.mxu0 0.0
    %470 = vmatpush1.msra.mxu0 0.0
    %471 = vmatprep.subr.mxu0 0.0
    %472 = vmatpush1.msra.mxu0 0.0
    %473 = vmatprep.subr.mxu0 0.0
    %474 = vmatpush1.msra.mxu0 0.0
    %475 = vmatprep.subr.mxu0 0.0
    %476 = vmatpush1.msra.mxu0 0.0
    %477 = vmatprep.subr.mxu0 0.0
    %478 = vmatpush1.msra.mxu0 0.0
    %479 = vmatprep.subr.mxu0 0.0
    %480 = vmatpush1.msra.mxu0 0.0
    %481 = vmatprep.subr.mxu0 0.0
    %482 = vmatpush1.msra.mxu0 0.0
    %483 = vmatprep.subr.mxu0 0.0
    %484 = vmatpush1.msra.mxu0 0.0
    %485 = vmatprep.subr.mxu0 0.0
    %486 = vmatpush1.msra.mxu0 0.0
    %487 = vmatprep.subr.mxu0 0.0
    %488 = vmatpush1.msra.mxu0 0.0
    %489 = vmatprep.subr.mxu0 0.0
    %490 = vmatpush1.msra.mxu0 0.0
    %491 = vmatprep.subr.mxu0 0.0
    %492 = vmatpush1.msra.mxu0 0.0
    %493 = vmatprep.mubr.f32.mxu0 0.0
    %494 = vmatmul.mubr.f32.gmra.mrb[0].mxu0 %v427
    %v495 = vpop.f32.mrb[0].mxu0
    %v496 = vadd.f32 %v116, %v495
    %v497 = vpop.f32.mrb[0].mxu0
    %498 = vdwg.mxu0
    %v499 = vxor.u32 %v496, 2147483648
    %v500 = vmul.f32 %v499, 1.442695
    %v501 = vpow.pop %v500
    %v502 = vadd.f32 %v501, 1.0
    %v503 = vrcp.pop %v502
    %v504 = vmul.f32 1.0, %v503
    %v505 = vmul.f32 %v504, 2.0
    %v506 = vsub.f32 %v505, 1.0
    %v507 = vmul.f32 %v504, %v417
    %509 = vrot.lane.b32.xlu0 %v506, 64
    %v510 = vpop.permute.xlu0 %509
    %v512 = vmul.f32 %v504, %v510
    %514 = vrot.lane.b32.xlu0 %v512, 32
    %v515 = vpop.permute.xlu0 %514
    %v517 = vadd.f32 %v507, %v515
    %v518 = vtanh.pop %v517
    %520 = vrot.lane.b32.xlu0 %v518, 64
    %v521 = vpop.permute.xlu0 %520
    %v523 = vmul.f32 %v504, %v521
    %525 = vrot.lane.b32.xlu0 %v523, 32
    %v526 = vpop.permute.xlu0 %525
    %v527 = vsel %vm226, %v526, 0
    %529 = vmatprep.subr.mxu0 0.0
    %530 = vmatpush1.msra.mxu0 %v100
    %531 = vmatprep.subr.mxu0 0.0
    %532 = vmatpush1.msra.mxu0 %v101
    %533 = vmatprep.subr.mxu0 0.0
    %534 = vmatpush1.msra.mxu0 %v102
    %535 = vmatprep.subr.mxu0 0.0
    %536 = vmatpush1.msra.mxu0 %v103
    %537 = vmatprep.subr.mxu0 0.0
    %538 = vmatpush1.msra.mxu0 0.0
    %539 = vmatprep.subr.mxu0 0.0
    %540 = vmatpush1.msra.mxu0 0.0
    %541 = vmatprep.subr.mxu0 0.0
    %542 = vmatpush1.msra.mxu0 0.0
    %543 = vmatprep.subr.mxu0 0.0
    %544 = vmatpush1.msra.mxu0 0.0
    %545 = vmatprep.subr.mxu0 0.0
    %546 = vmatpush1.msra.mxu0 0.0
    %547 = vmatprep.subr.mxu0 0.0
    %548 = vmatpush1.msra.mxu0 0.0
    %549 = vmatprep.subr.mxu0 0.0
    %550 = vmatpush1.msra.mxu0 0.0
    %551 = vmatprep.subr.mxu0 0.0
    %552 = vmatpush1.msra.mxu0 0.0
    %553 = vmatprep.subr.mxu0 0.0
    %554 = vmatpush1.msra.mxu0 0.0
    %555 = vmatprep.subr.mxu0 0.0
    %556 = vmatpush1.msra.mxu0 0.0
    %557 = vmatprep.subr.mxu0 0.0
    %558 = vmatpush1.msra.mxu0 0.0
    %559 = vmatprep.subr.mxu0 0.0
    %560 = vmatpush1.msra.mxu0 0.0
    %561 = vmatprep.subr.mxu0 0.0
    %562 = vmatpush1.msra.mxu0 0.0
    %563 = vmatprep.subr.mxu0 0.0
    %564 = vmatpush1.msra.mxu0 0.0
    %565 = vmatprep.subr.mxu0 0.0
    %566 = vmatpush1.msra.mxu0 0.0
    %567 = vmatprep.subr.mxu0 0.0
    %568 = vmatpush1.msra.mxu0 0.0
    %569 = vmatprep.subr.mxu0 0.0
    %570 = vmatpush1.msra.mxu0 0.0
    %571 = vmatprep.subr.mxu0 0.0
    %572 = vmatpush1.msra.mxu0 0.0
    %573 = vmatprep.subr.mxu0 0.0
    %574 = vmatpush1.msra.mxu0 0.0
    %575 = vmatprep.subr.mxu0 0.0
    %576 = vmatpush1.msra.mxu0 0.0
    %577 = vmatprep.subr.mxu0 0.0
    %578 = vmatpush1.msra.mxu0 0.0
    %579 = vmatprep.subr.mxu0 0.0
    %580 = vmatpush1.msra.mxu0 0.0
    %581 = vmatprep.subr.mxu0 0.0
    %582 = vmatpush1.msra.mxu0 0.0
    %583 = vmatprep.subr.mxu0 0.0
    %584 = vmatpush1.msra.mxu0 0.0
    %585 = vmatprep.subr.mxu0 0.0
    %586 = vmatpush1.msra.mxu0 0.0
    %587 = vmatprep.subr.mxu0 0.0
    %588 = vmatpush1.msra.mxu0 0.0
    %589 = vmatprep.subr.mxu0 0.0
    %590 = vmatpush1.msra.mxu0 0.0
    %591 = vmatprep.subr.mxu0 0.0
    %592 = vmatpush1.msra.mxu0 0.0
    %593 = vmatprep.mubr.f32.mxu0 0.0
    %594 = vmatmul.mubr.f32.gmra.mrb[0].mxu0 %v527
    %v595 = vpop.f32.mrb[0].mxu0
    %v596 = vadd.f32 %v116, %v595
    %v597 = vpop.f32.mrb[0].mxu0
    %598 = vdwg.mxu0
    %v599 = vxor.u32 %v596, 2147483648
    %v600 = vmul.f32 %v599, 1.442695
    %v601 = vpow.pop %v600
    %v602 = vadd.f32 %v601, 1.0
    %v603 = vrcp.pop %v602
    %v604 = vmul.f32 1.0, %v603
    %v605 = vmul.f32 %v604, 2.0
    %v606 = vsub.f32 %v605, 1.0
    %v607 = vmul.f32 %v604, %v517
    %609 = vrot.lane.b32.xlu0 %v606, 64
    %v610 = vpop.permute.xlu0 %609
    %v612 = vmul.f32 %v604, %v610
    %614 = vrot.lane.b32.xlu0 %v612, 32
    %v615 = vpop.permute.xlu0 %614
    %v617 = vadd.f32 %v607, %v615
    %v618 = vtanh.pop %v617
    %620 = vrot.lane.b32.xlu0 %v618, 64
    %v621 = vpop.permute.xlu0 %620
    %v623 = vmul.f32 %v604, %v621
    %625 = vrot.lane.b32.xlu0 %v623, 32
    %v626 = vpop.permute.xlu0 %625
    %v627 = vsel %vm226, %v626, 0
    %629 = vmatprep.subr.mxu0 0.0
    %630 = vmatpush1.msra.mxu0 %v100
    %631 = vmatprep.subr.mxu0 0.0
    %632 = vmatpush1.msra.mxu0 %v101
    %633 = vmatprep.subr.mxu0 0.0
    %634 = vmatpush1.msra.mxu0 %v102
    %635 = vmatprep.subr.mxu0 0.0
    %636 = vmatpush1.msra.mxu0 %v103
    %637 = vmatprep.subr.mxu0 0.0
    %638 = vmatpush1.msra.mxu0 0.0
    %639 = vmatprep.subr.mxu0 0.0
    %640 = vmatpush1.msra.mxu0 0.0
    %641 = vmatprep.subr.mxu0 0.0
    %642 = vmatpush1.msra.mxu0 0.0
    %643 = vmatprep.subr.mxu0 0.0
    %644 = vmatpush1.msra.mxu0 0.0
    %645 = vmatprep.subr.mxu0 0.0
    %646 = vmatpush1.msra.mxu0 0.0
    %647 = vmatprep.subr.mxu0 0.0
    %648 = vmatpush1.msra.mxu0 0.0
    %649 = vmatprep.subr.mxu0 0.0
    %650 = vmatpush1.msra.mxu0 0.0
    %651 = vmatprep.subr.mxu0 0.0
    %652 = vmatpush1.msra.mxu0 0.0
    %653 = vmatprep.subr.mxu0 0.0
    %654 = vmatpush1.msra.mxu0 0.0
    %655 = vmatprep.subr.mxu0 0.0
    %656 = vmatpush1.msra.mxu0 0.0
    %657 = vmatprep.subr.mxu0 0.0
    %658 = vmatpush1.msra.mxu0 0.0
    %659 = vmatprep.subr.mxu0 0.0
    %660 = vmatpush1.msra.mxu0 0.0
    %661 = vmatprep.subr.mxu0 0.0
    %662 = vmatpush1.msra.mxu0 0.0
    %663 = vmatprep.subr.mxu0 0.0
    %664 = vmatpush1.msra.mxu0 0.0
    %665 = vmatprep.subr.mxu0 0.0
    %666 = vmatpush1.msra.mxu0 0.0
    %667 = vmatprep.subr.mxu0 0.0
    %668 = vmatpush1.msra.mxu0 0.0
    %669 = vmatprep.subr.mxu0 0.0
    %670 = vmatpush1.msra.mxu0 0.0
    %671 = vmatprep.subr.mxu0 0.0
    %672 = vmatpush1.msra.mxu0 0.0
    %673 = vmatprep.subr.mxu0 0.0
    %674 = vmatpush1.msra.mxu0 0.0
    %675 = vmatprep.subr.mxu0 0.0
    %676 = vmatpush1.msra.mxu0 0.0
    %677 = vmatprep.subr.mxu0 0.0
    %678 = vmatpush1.msra.mxu0 0.0
    %679 = vmatprep.subr.mxu0 0.0
    %680 = vmatpush1.msra.mxu0 0.0
    %681 = vmatprep.subr.mxu0 0.0
    %682 = vmatpush1.msra.mxu0 0.0
    %683 = vmatprep.subr.mxu0 0.0
    %684 = vmatpush1.msra.mxu0 0.0
    %685 = vmatprep.subr.mxu0 0.0
    %686 = vmatpush1.msra.mxu0 0.0
    %687 = vmatprep.subr.mxu0 0.0
    %688 = vmatpush1.msra.mxu0 0.0
    %689 = vmatprep.subr.mxu0 0.0
    %690 = vmatpush1.msra.mxu0 0.0
    %691 = vmatprep.subr.mxu0 0.0
    %692 = vmatpush1.msra.mxu0 0.0
    %693 = vmatprep.mubr.f32.mxu0 0.0
    %694 = vmatmul.mubr.f32.gmra.mrb[0].mxu0 %v627
    %v695 = vpop.f32.mrb[0].mxu0
    %v696 = vadd.f32 %v116, %v695
    %v697 = vpop.f32.mrb[0].mxu0
    %698 = vdwg.mxu0
    %v699 = vxor.u32 %v696, 2147483648
    %v700 = vmul.f32 %v699, 1.442695
    %v701 = vpow.pop %v700
    %v702 = vadd.f32 %v701, 1.0
    %v703 = vrcp.pop %v702
    %v704 = vmul.f32 1.0, %v703
    %v705 = vmul.f32 %v704, 2.0
    %v706 = vsub.f32 %v705, 1.0
    %v707 = vmul.f32 %v704, %v617
    %709 = vrot.lane.b32.xlu0 %v706, 64
    %v710 = vpop.permute.xlu0 %709
    %v712 = vmul.f32 %v704, %v710
    %714 = vrot.lane.b32.xlu0 %v712, 32
    %v715 = vpop.permute.xlu0 %714
    %v717 = vadd.f32 %v707, %v715
    %v718 = vtanh.pop %v717
    %720 = vrot.lane.b32.xlu0 %v718, 64
    %v721 = vpop.permute.xlu0 %720
    %v723 = vmul.f32 %v704, %v721
    %725 = vrot.lane.b32.xlu0 %v723, 32
    %v726 = vpop.permute.xlu0 %725
    %v727 = vsel %vm226, %v726, 0
    %729 = vmatprep.subr.mxu0 0.0
    %730 = vmatpush1.msra.mxu0 %v100
    %731 = vmatprep.subr.mxu0 0.0
    %732 = vmatpush1.msra.mxu0 %v101
    %733 = vmatprep.subr.mxu0 0.0
    %734 = vmatpush1.msra.mxu0 %v102
    %735 = vmatprep.subr.mxu0 0.0
    %736 = vmatpush1.msra.mxu0 %v103
    %737 = vmatprep.subr.mxu0 0.0
    %738 = vmatpush1.msra.mxu0 0.0
    %739 = vmatprep.subr.mxu0 0.0
    %740 = vmatpush1.msra.mxu0 0.0
    %741 = vmatprep.subr.mxu0 0.0
    %742 = vmatpush1.msra.mxu0 0.0
    %743 = vmatprep.subr.mxu0 0.0
    %744 = vmatpush1.msra.mxu0 0.0
    %745 = vmatprep.subr.mxu0 0.0
    %746 = vmatpush1.msra.mxu0 0.0
    %747 = vmatprep.subr.mxu0 0.0
    %748 = vmatpush1.msra.mxu0 0.0
    %749 = vmatprep.subr.mxu0 0.0
    %750 = vmatpush1.msra.mxu0 0.0
    %751 = vmatprep.subr.mxu0 0.0
    %752 = vmatpush1.msra.mxu0 0.0
    %753 = vmatprep.subr.mxu0 0.0
    %754 = vmatpush1.msra.mxu0 0.0
    %755 = vmatprep.subr.mxu0 0.0
    %756 = vmatpush1.msra.mxu0 0.0
    %757 = vmatprep.subr.mxu0 0.0
    %758 = vmatpush1.msra.mxu0 0.0
    %759 = vmatprep.subr.mxu0 0.0
    %760 = vmatpush1.msra.mxu0 0.0
    %761 = vmatprep.subr.mxu0 0.0
    %762 = vmatpush1.msra.mxu0 0.0
    %763 = vmatprep.subr.mxu0 0.0
    %764 = vmatpush1.msra.mxu0 0.0
    %765 = vmatprep.subr.mxu0 0.0
    %766 = vmatpush1.msra.mxu0 0.0
    %767 = vmatprep.subr.mxu0 0.0
    %768 = vmatpush1.msra.mxu0 0.0
    %769 = vmatprep.subr.mxu0 0.0
    %770 = vmatpush1.msra.mxu0 0.0
    %771 = vmatprep.subr.mxu0 0.0
    %772 = vmatpush1.msra.mxu0 0.0
    %773 = vmatprep.subr.mxu0 0.0
    %774 = vmatpush1.msra.mxu0 0.0
    %775 = vmatprep.subr.mxu0 0.0
    %776 = vmatpush1.msra.mxu0 0.0
    %777 = vmatprep.subr.mxu0 0.0
    %778 = vmatpush1.msra.mxu0 0.0
    %779 = vmatprep.subr.mxu0 0.0
    %780 = vmatpush1.msra.mxu0 0.0
    %781 = vmatprep.subr.mxu0 0.0
    %782 = vmatpush1.msra.mxu0 0.0
    %783 = vmatprep.subr.mxu0 0.0
    %784 = vmatpush1.msra.mxu0 0.0
    %785 = vmatprep.subr.mxu0 0.0
    %786 = vmatpush1.msra.mxu0 0.0
    %787 = vmatprep.subr.mxu0 0.0
    %788 = vmatpush1.msra.mxu0 0.0
    %789 = vmatprep.subr.mxu0 0.0
    %790 = vmatpush1.msra.mxu0 0.0
    %791 = vmatprep.subr.mxu0 0.0
    %792 = vmatpush1.msra.mxu0 0.0
    %793 = vmatprep.mubr.f32.mxu0 0.0
    %794 = vmatmul.mubr.f32.gmra.mrb[0].mxu0 %v727
    %v795 = vpop.f32.mrb[0].mxu0
    %v796 = vadd.f32 %v116, %v795
    %v797 = vpop.f32.mrb[0].mxu0
    %798 = vdwg.mxu0
    %v799 = vxor.u32 %v796, 2147483648
    %v800 = vmul.f32 %v799, 1.442695
    %v801 = vpow.pop %v800
    %v802 = vadd.f32 %v801, 1.0
    %v803 = vrcp.pop %v802
    %v804 = vmul.f32 1.0, %v803
    %v805 = vmul.f32 %v804, 2.0
    %v806 = vsub.f32 %v805, 1.0
    %v807 = vmul.f32 %v804, %v717
    %809 = vrot.lane.b32.xlu0 %v806, 64
    %v810 = vpop.permute.xlu0 %809
    %v812 = vmul.f32 %v804, %v810
    %814 = vrot.lane.b32.xlu0 %v812, 32
    %v815 = vpop.permute.xlu0 %814
    %v817 = vadd.f32 %v807, %v815
    %v818 = vtanh.pop %v817
    %820 = vrot.lane.b32.xlu0 %v818, 64
    %v821 = vpop.permute.xlu0 %820
    %v823 = vmul.f32 %v804, %v821
    %825 = vrot.lane.b32.xlu0 %v823, 32
    %v826 = vpop.permute.xlu0 %825
    %v827 = vsel %vm226, %v826, 0
    %829 = vmatprep.subr.mxu0 0.0
    %830 = vmatpush1.msra.mxu0 %v100
    %831 = vmatprep.subr.mxu0 0.0
    %832 = vmatpush1.msra.mxu0 %v101
    %833 = vmatprep.subr.mxu0 0.0
    %834 = vmatpush1.msra.mxu0 %v102
    %835 = vmatprep.subr.mxu0 0.0
    %836 = vmatpush1.msra.mxu0 %v103
    %837 = vmatprep.subr.mxu0 0.0
    %838 = vmatpush1.msra.mxu0 0.0
    %839 = vmatprep.subr.mxu0 0.0
    %840 = vmatpush1.msra.mxu0 0.0
    %841 = vmatprep.subr.mxu0 0.0
    %842 = vmatpush1.msra.mxu0 0.0
    %843 = vmatprep.subr.mxu0 0.0
    %844 = vmatpush1.msra.mxu0 0.0
    %845 = vmatprep.subr.mxu0 0.0
    %846 = vmatpush1.msra.mxu0 0.0
    %847 = vmatprep.subr.mxu0 0.0
    %848 = vmatpush1.msra.mxu0 0.0
    %849 = vmatprep.subr.mxu0 0.0
    %850 = vmatpush1.msra.mxu0 0.0
    %851 = vmatprep.subr.mxu0 0.0
    %852 = vmatpush1.msra.mxu0 0.0
    %853 = vmatprep.subr.mxu0 0.0
    %854 = vmatpush1.msra.mxu0 0.0
    %855 = vmatprep.subr.mxu0 0.0
    %856 = vmatpush1.msra.mxu0 0.0
    %857 = vmatprep.subr.mxu0 0.0
    %858 = vmatpush1.msra.mxu0 0.0
    %859 = vmatprep.subr.mxu0 0.0
    %860 = vmatpush1.msra.mxu0 0.0
    %861 = vmatprep.subr.mxu0 0.0
    %862 = vmatpush1.msra.mxu0 0.0
    %863 = vmatprep.subr.mxu0 0.0
    %864 = vmatpush1.msra.mxu0 0.0
    %865 = vmatprep.subr.mxu0 0.0
    %866 = vmatpush1.msra.mxu0 0.0
    %867 = vmatprep.subr.mxu0 0.0
    %868 = vmatpush1.msra.mxu0 0.0
    %869 = vmatprep.subr.mxu0 0.0
    %870 = vmatpush1.msra.mxu0 0.0
    %871 = vmatprep.subr.mxu0 0.0
    %872 = vmatpush1.msra.mxu0 0.0
    %873 = vmatprep.subr.mxu0 0.0
    %874 = vmatpush1.msra.mxu0 0.0
    %875 = vmatprep.subr.mxu0 0.0
    %876 = vmatpush1.msra.mxu0 0.0
    %877 = vmatprep.subr.mxu0 0.0
    %878 = vmatpush1.msra.mxu0 0.0
    %879 = vmatprep.subr.mxu0 0.0
    %880 = vmatpush1.msra.mxu0 0.0
    %881 = vmatprep.subr.mxu0 0.0
    %882 = vmatpush1.msra.mxu0 0.0
    %883 = vmatprep.subr.mxu0 0.0
    %884 = vmatpush1.msra.mxu0 0.0
    %885 = vmatprep.subr.mxu0 0.0
    %886 = vmatpush1.msra.mxu0 0.0
    %887 = vmatprep.subr.mxu0 0.0
    %888 = vmatpush1.msra.mxu0 0.0
    %889 = vmatprep.subr.mxu0 0.0
    %890 = vmatpush1.msra.mxu0 0.0
    %891 = vmatprep.subr.mxu0 0.0
    %892 = vmatpush1.msra.mxu0 0.0
    %893 = vmatprep.mubr.f32.mxu0 0.0
    %894 = vmatmul.mubr.f32.gmra.mrb[0].mxu0 %v827
    %v895 = vpop.f32.mrb[0].mxu0
    %v896 = vadd.f32 %v116, %v895
    %v897 = vpop.f32.mrb[0].mxu0
    %898 = vdwg.mxu0
    %v899 = vxor.u32 %v896, 2147483648
    %v900 = vmul.f32 %v899, 1.442695
    %v901 = vpow.pop %v900
    %v902 = vadd.f32 %v901, 1.0
    %v903 = vrcp.pop %v902
    %v904 = vmul.f32 1.0, %v903
    %v905 = vmul.f32 %v904, 2.0
    %v906 = vsub.f32 %v905, 1.0
    %v907 = vmul.f32 %v904, %v817
    %909 = vrot.lane.b32.xlu0 %v906, 64
    %v910 = vpop.permute.xlu0 %909
    %v912 = vmul.f32 %v904, %v910
    %914 = vrot.lane.b32.xlu0 %v912, 32
    %v915 = vpop.permute.xlu0 %914
    %v917 = vadd.f32 %v907, %v915
    %v918 = vtanh.pop %v917
    %920 = vrot.lane.b32.xlu0 %v918, 64
    %v921 = vpop.permute.xlu0 %920
    %v923 = vmul.f32 %v904, %v921
    %925 = vrot.lane.b32.xlu0 %v323, 64
    %v926 = vpop.permute.xlu0 %925
    %928 = vrot.lane.b32.xlu0 %v423, 96
    %v929 = vpop.permute.xlu0 %928
    %932 = vrot.lane.b32.xlu0 %v723, 64
    %v933 = vpop.permute.xlu0 %932
    %935 = vrot.lane.b32.xlu0 %v823, 96
    %v936 = vpop.permute.xlu0 %935
    %v938 = vsel %vm226, %v225, %v926
    %vm939 = vcmask 523264
    %v940 = vsel %vm939, %v938, %v929
    %vm941 = vcmask 785408
    %v942 = vsel %vm941, %v940, %v523
    %v943 = vsel %vm226, %v626, %v933
    %v944 = vsel %vm939, %v943, %v936
    %v945 = vsel %vm941, %v944, %v923
    %v946 = vld [vmem:[#allocation10] sm:$0xff]
    %v947 = vld [vmem:[#allocation10 + $0x8] sm:$0xff]
    %v948 = vld [vmem:[#allocation10 + $0x10] sm:$0xff]
    %v949 = vld [vmem:[#allocation10 + $0x18] sm:$0xff]
    %v950 = vld [vmem:[#allocation10 + $0x20] sm:$0xff]
    %v951 = vld [vmem:[#allocation10 + $0x28] sm:$0xff]
    %v952 = vld [vmem:[#allocation10 + $0x30] sm:$0xff]
    %v953 = vld [vmem:[#allocation10 + $0x38] sm:$0xff]
    %v954 = vld [vmem:[#allocation10 + $0x40] sm:$0xff]
    %v955 = vld [vmem:[#allocation10 + $0x48] sm:$0xff]
    %v956 = vld [vmem:[#allocation10 + $0x50] sm:$0xff]
    %v957 = vld [vmem:[#allocation10 + $0x58] sm:$0xff]
    %v958 = vld [vmem:[#allocation10 + $0x60] sm:$0xff]
    %v959 = vld [vmem:[#allocation10 + $0x68] sm:$0xff]
    %v960 = vld [vmem:[#allocation10 + $0x70] sm:$0xff]
    %v961 = vld [vmem:[#allocation10 + $0x78] sm:$0xff]
    %v962 = vld [vmem:[#allocation10 + $0x80] sm:$0xff]
    %v963 = vld [vmem:[#allocation10 + $0x88] sm:$0xff]
    %v964 = vld [vmem:[#allocation10 + $0x90] sm:$0xff]
    %v965 = vld [vmem:[#allocation10 + $0x98] sm:$0xff]
    %v966 = vld [vmem:[#allocation10 + $0xa0] sm:$0xff]
    %v967 = vld [vmem:[#allocation10 + $0xa8] sm:$0xff]
    %v968 = vld [vmem:[#allocation10 + $0xb0] sm:$0xff]
    %v969 = vld [vmem:[#allocation10 + $0xb8] sm:$0xff]
    %v970 = vld [vmem:[#allocation10 + $0xc0] sm:$0xff]
    %v971 = vld [vmem:[#allocation10 + $0xc8] sm:$0xff]
    %v972 = vld [vmem:[#allocation10 + $0xd0] sm:$0xff]
    %v973 = vld [vmem:[#allocation10 + $0xd8] sm:$0xff]
    %v974 = vld [vmem:[#allocation10 + $0xe0] sm:$0xff]
    %v975 = vld [vmem:[#allocation10 + $0xe8] sm:$0xff]
    %v976 = vld [vmem:[#allocation10 + $0xf0] sm:$0xff]
    %v977 = vld [vmem:[#allocation10 + $0xf8] sm:$0xff]
    %v978 = vld [vmem:[%s7] sm:$0x1]
    %v980 = vlaneseq
    %v981 = vshrl.u32 %v980, 7
    %v982 = vsub.s32 0, %v981
    %v983 = vrot.slane %v978, %v982
    %985 = vmatprep.subr.mxu0 0.0
    %986 = vmatpush1.msra.mxu0 %v946
    %987 = vmatprep.subr.mxu0 0.0
    %988 = vmatpush1.msra.mxu0 %v947
    %989 = vmatprep.subr.mxu0 0.0
    %990 = vmatpush1.msra.mxu0 %v948
    %991 = vmatprep.subr.mxu0 0.0
    %992 = vmatpush1.msra.mxu0 %v949
    %993 = vmatprep.subr.mxu0 0.0
    %994 = vmatpush1.msra.mxu0 %v950
    %995 = vmatprep.subr.mxu0 0.0
    %996 = vmatpush1.msra.mxu0 %v951
    %997 = vmatprep.subr.mxu0 0.0
    %998 = vmatpush1.msra.mxu0 %v952
    %999 = vmatprep.subr.mxu0 0.0
    %1000 = vmatpush1.msra.mxu0 %v953
    %1001 = vmatprep.subr.mxu0 0.0
    %1002 = vmatpush1.msra.mxu0 %v954
    %1003 = vmatprep.subr.mxu0 0.0
    %1004 = vmatpush1.msra.mxu0 %v955
    %1005 = vmatprep.subr.mxu0 0.0
    %1006 = vmatpush1.msra.mxu0 %v956
    %1007 = vmatprep.subr.mxu0 0.0
    %1008 = vmatpush1.msra.mxu0 %v957
    %1009 = vmatprep.subr.mxu0 0.0
    %1010 = vmatpush1.msra.mxu0 %v958
    %1011 = vmatprep.subr.mxu0 0.0
    %1012 = vmatpush1.msra.mxu0 %v959
    %1013 = vmatprep.subr.mxu0 0.0
    %1014 = vmatpush1.msra.mxu0 %v960
    %1015 = vmatprep.subr.mxu0 0.0
    %1016 = vmatpush1.msra.mxu0 %v961
    %1017 = vmatprep.subr.mxu0 0.0
    %1018 = vmatpush1.msra.mxu0 %v962
    %1019 = vmatprep.subr.mxu0 0.0
    %1020 = vmatpush1.msra.mxu0 %v963
    %1021 = vmatprep.subr.mxu0 0.0
    %1022 = vmatpush1.msra.mxu0 %v964
    %1023 = vmatprep.subr.mxu0 0.0
    %1024 = vmatpush1.msra.mxu0 %v965
    %1025 = vmatprep.subr.mxu0 0.0
    %1026 = vmatpush1.msra.mxu0 %v966
    %1027 = vmatprep.subr.mxu0 0.0
    %1028 = vmatpush1.msra.mxu0 %v967
    %1029 = vmatprep.subr.mxu0 0.0
    %1030 = vmatpush1.msra.mxu0 %v968
    %1031 = vmatprep.subr.mxu0 0.0
    %1032 = vmatpush1.msra.mxu0 %v969
    %1033 = vmatprep.subr.mxu0 0.0
    %1034 = vmatpush1.msra.mxu0 %v970
    %1035 = vmatprep.subr.mxu0 0.0
    %1036 = vmatpush1.msra.mxu0 %v971
    %1037 = vmatprep.subr.mxu0 0.0
    %1038 = vmatpush1.msra.mxu0 %v972
    %1039 = vmatprep.subr.mxu0 0.0
    %1040 = vmatpush1.msra.mxu0 %v973
    %1041 = vmatprep.subr.mxu0 0.0
    %1042 = vmatpush1.msra.mxu0 %v974
    %1043 = vmatprep.subr.mxu0 0.0
    %1044 = vmatpush1.msra.mxu0 %v975
    %1045 = vmatprep.subr.mxu0 0.0
    %1046 = vmatpush1.msra.mxu0 %v976
    %1047 = vmatprep.subr.mxu0 0.0
    %1048 = vmatpush1.msra.mxu0 %v977
    %1049 = vmatprep.mubr.f32.mxu0 %v945
    %1050 = vmatmul.mubr.f32.gmra.mrb[0].mxu0 %v942
    %v1051 = vpop.f32.mrb[0].mxu0
    %v1052 = vadd.f32 %v983, %v1051
    %v1053 = vpop.f32.mrb[0].mxu0
    %1054 = vdwg.mxu0
    %v1055 = vrot.slane %v1052, 4
    %v1056 = vadd.f32 %v1052, %v1055
    %v1057 = vrot.slane %v1056, 2
    %v1058 = vadd.f32 %v1056, %v1057
    %v1059 = vrot.slane %v1058, 1
    %v1060 = vadd.f32 %v1058, %v1059
    %v1061 = vrcp.pop 8.0
    %v1062 = vmul.f32 %v1060, %v1061
    %v1063 = vsub.f32 %v1052, %v1062
    %v1064 = vmul.f32 %v1063, %v1063
    %v1065 = vrot.slane %v1064, 4
    %v1066 = vadd.f32 %v1064, %v1065
    %v1067 = vrot.slane %v1066, 2
    %v1068 = vadd.f32 %v1066, %v1067
    %v1069 = vrot.slane %v1068, 1
    %v1070 = vadd.f32 %v1068, %v1069
    %v1071 = vmul.f32 %v1070, %v1061
    %v1072 = vadd.f32 %v1071, 1e-05
    %v1073 = vrsqrt.pop %v1072
    %v1074 = vmul.f32 %v1063, %v1073
    %1075 = vst [vmem:[#allocation11] sm:$0xff] %v1074
    // Predicated region
    $region54: #{tpu_custom_call.1} parent=1 // pred_check
      _
    $region55: #{tpu_custom_call.1} parent=1 // pred_check_branch
      %1077 = sbr.rel (0) target = $region57
    $region56: #{tpu_custom_call.1} parent=1 // pred_region
      %s1079 = ssub.s32 128, 128
      %1080 = vsyncadd [#allocation4], %s1079
      %s1082 = sshll.u32 [#allocation11], 4
      %s1083 = int_to_ptr.vmem [resolvable:$true] %s1082
      %1085 = dma.vmem_to_hbm [thread:$0]  %s1083, 128, %s8, [#allocation4]
    $region57: #{tpu_custom_call.1} parent=1 // pred_fallthru
      _
    // Predicated region
    $region58: #{tpu_custom_call.1} parent=1 // pred_check
      _
    $region59: #{tpu_custom_call.1} parent=1 // pred_check_branch
      %1087 = sbr.rel (0) target = $region61
    $region60: #{tpu_custom_call.1} parent=1 // pred_region
      %1088 = dma.done [#allocation4], 128
    $region61: #{tpu_custom_call.1} parent=1 // pred_fallthru
      _
    %1089 = vsyncpa [#allocation3], 1
    %1090 = vsyncpa [#allocation6], 1
    %1091 = vsyncpa [#allocation9], 1
    %1092 = vsyncpa [#allocation4], 1

</llo_original>
